<compile_context>
chip_gen: v5e
topology: v5e:2x2
jax: 0.10.0
libtpu: 0.0.40
codegen_flags: <defaults>
</compile_context>

<pallas_src>
import jax
import jax.numpy as jnp
from jax import lax
from jax.experimental import pallas as pl
from jax.experimental.pallas import tpu as pltpu


_MAX_TB = 16384       # hard cap on rows per grid block (keeps blocks small in VMEM)
_ONE_BLOCK_MAX = 1024  # below this, take the whole batch in a single grid step


def _cdiv(a, b):
    return -(-a // b)


def _round_up(x, m):
    return _cdiv(x, m) * m


def _block_plan(B, D):
    """Returns (P, nb, TB, Bp): lane-pack factor, #grid blocks, rows/block, padded batch."""
    P = 128 // D if (D <= 128 and 128 % D == 0) else 1   # samples packed per 128-lane row
    if B <= _ONE_BLOCK_MAX:
        nb = 1                                  # single step: no per-step overhead (v5e/v6e)
    else:
        nb = max(2, _cdiv(B, _MAX_TB))          # >=2 balanced blocks so both v7x TCs work
    TB = _round_up(_cdiv(B, nb), 128)           # mult of 128: lane-dense kld store, and
    return P, nb, TB, TB * nb                   # TB//P is a multiple of 8 (P | 128)


def _vcd_train_kernel(w_ref, idxp_ref, idxrow_ref, mean_ref, logvar_ref, eps_ref,
                      code_ref, kld_ref):
    K, D = mean_ref.shape
    TBq, P = idxp_ref.shape                     # packed rows per block, samples per row

    mean_t = mean_ref[...].astype(jnp.float32)      # (K, D), VMEM resident
    logvar_t = logvar_ref[...].astype(jnp.float32)  # (K, D)
    std_t = jnp.exp(0.5 * logvar_t)                 # only K*D transcendentals per block
    w = w_ref[0]                                    # SMEM scalar (no recompile on anneal)

    # ---- per-KEY KLD: exp(logvar) == std*std -> a single EUP pass ----
    kld_key = (-0.5 * w) * jnp.sum(
        1.0 + logvar_t - mean_t * mean_t - std_t * std_t,
        axis=1, keepdims=True)                      # (K, 1)

    # ---- block-diagonal replicated tables: bd[j*K + k, j*D + d] = t[k, d] ----
    def blockdiag(t):
        if P == 1:
            return t
        z = jnp.zeros_like(t)
        rows = [jnp.concatenate([t if jj == j else z for jj in range(P)], axis=1)
                for j in range(P)]
        return jnp.concatenate(rows, axis=0)        # (P*K, P*D) == (P*K, 128)

    mean_bd = blockdiag(mean_t)
    std_bd = blockdiag(std_t)

    # ---- packed one-hot: onehot[r, j*K + k] = (key[P*r + j] == k) ----
    idxp = idxp_ref[...]                            # (TBq, P) int32
    lane = lax.broadcasted_iota(jnp.int32, (TBq, P * K), 1)
    onehot = jnp.zeros((TBq, P * K), jnp.float32)
    for j in range(P):
        onehot = onehot + (idxp[:, j:j + 1] + j * K == lane).astype(jnp.float32)

    # ---- fused dict-key gather on the (otherwise idle) MXU, directly packed ----
    mean_g = jnp.dot(onehot, mean_bd, preferred_element_type=jnp.float32)   # (TBq, P*D)
    std_g = jnp.dot(onehot, std_bd, preferred_element_type=jnp.float32)     # (TBq, P*D)

    # reparameterization on full 128-lane vregs; single unmasked lane-dense store
    code_ref[...] = (eps_ref[...].astype(jnp.float32) * std_g
                     + mean_g).astype(code_ref.dtype)

    # ---- per-sample KLD, gathered per key, stored lane-dense as (1, TB) in f32 ----
    idx_row = idxrow_ref[...]                       # (1, TB) int32
    onehot_r = (idx_row == lax.broadcasted_iota(jnp.int32, (K, idx_row.shape[1]), 0)
                ).astype(jnp.float32)               # (K, TB)
    kld_ref[...] = jnp.sum(onehot_r * kld_key, axis=0, keepdims=True
                           ).astype(kld_ref.dtype)  # (1, TB)


def variational_code_dict_forward(mean_table, logvar_table, key_indices, *,
                                  variational_weight, training, rng_key=None):
    """Forward pass of VariationalCodeDict.

    mean_table / logvar_table: (K, D) stacked per-key parameters
    key_indices: (B,) int32 indices into the key table (== motion_batch[key_type])
    Returns {'code': (B, D) in param dtype, 'kld': (B,) float32}.
    """
    K, D = int(mean_table.shape[0]), int(mean_table.shape[1])
    B = int(key_indices.shape[0])
    out_dtype = mean_table.dtype

    if not training:
        # eval path: pure parameter gather, no kernel needed
        code = jnp.take(mean_table, key_indices, axis=0)
        return {"code": code, "kld": jnp.zeros((B,), jnp.float32)}

    assert rng_key is not None, "training mode needs an rng key for eps"

    P, nb, TB, Bp = _block_plan(B, D)
    TBq = TB // P

    # Tiny glue (everything B*D-sized inside the kernel is packed lane-dense).
    idx = jnp.pad(key_indices.astype(jnp.int32), (0, Bp - B))   # pad rows use key 0
    idxp = idx.reshape(Bp // P, P)     # packed-row layout for the code gather
    idx_row = idx.reshape(1, Bp)       # lane layout for the lane-dense kld gather/store
    # TODO(synk): on a TPU-only deployment eps could be drawn in-kernel
    # (pltpu.prng_seed + pltpu.stateful_normal) to drop this (B, D) HBM read; it is kept
    # external so the kernel also lowers on the interpret/CPU fallback path.
    eps = jax.random.normal(rng_key, (Bp // P, P * D), dtype=jnp.float32)
    weight = jnp.full((1,), variational_weight, dtype=jnp.float32)

    code_packed, kld = pl.pallas_call(
        _vcd_train_kernel,
        out_shape=(jax.ShapeDtypeStruct((Bp // P, P * D), out_dtype),
                   jax.ShapeDtypeStruct((1, Bp), jnp.float32)),
        grid=(nb,),
        in_specs=[
            pl.BlockSpec(memory_space=pltpu.MemorySpace.SMEM),    # variational weight
            pl.BlockSpec((TBq, P), lambda i: (i, 0)),             # packed key indices
            pl.BlockSpec((1, TB), lambda i: (0, i)),              # row-layout key indices
            pl.BlockSpec((K, D), lambda i: (0, 0)),               # mean table (resident)
            pl.BlockSpec((K, D), lambda i: (0, 0)),               # logvar table (resident)
            pl.BlockSpec((TBq, P * D), lambda i: (i, 0)),         # eps (packed, lane-dense)
        ],
        out_specs=(
            pl.BlockSpec((TBq, P * D), lambda i: (i, 0)),         # code (packed, lane-dense)
            pl.BlockSpec((1, TB), lambda i: (0, i)),              # kld (lane-dense, f32)
        ),
        compiler_params=pltpu.CompilerParams(
            dimension_semantics=("parallel",)),
    )(weight, idxp, idx_row, mean_table, logvar_table, eps)

    code = code_packed.reshape(Bp, D)[:B]   # free row-major un-pack of the same buffer
    return {"code": code, "kld": kld[0, :B]}


if __name__ == "__main__":
    num_dims = 32              # opts.num_dims
    logvar_scale = -1.0        # opts.logvar_scale
    variational_weight = 0.01  # opts.variational_weight

    key_list = ["walk", "run", "jump", "sit"]       # K = 4 keys
    K = len(key_list)
    B = 16

    root = jax.random.PRNGKey(0)
    k_mean, k_idx, k_eps1, k_eps2, k_idx2 = jax.random.split(root, 5)

    # Per-key parameters.  __init__ uses zeros / logvar_scale*ones; perturb them so the
    # fused per-key gather is actually exercised by the checks below.
    mean_table = 0.5 * jax.random.normal(k_mean, (K, num_dims), dtype=jnp.float32)
    logvar_table = (logvar_scale * jnp.ones((K, num_dims), jnp.float32)
                    + 0.25 * jnp.arange(K, dtype=jnp.float32)[:, None])

    batch_idx = jax.random.randint(k_idx, (B,), 0, K).tolist()
    batch_keys = [key_list[i] for i in batch_idx]                  # motion_batch[key_type]
    key_to_idx = {k: i for i, k in enumerate(key_list)}
    key_indices = jnp.array([key_to_idx[k] for k in batch_keys], dtype=jnp.int32)

    # Plain-JAX per-sample stats (reference).
    cm = jnp.take(mean_table, key_indices, axis=0)
    clv = jnp.take(logvar_table, key_indices, axis=0)
    kld_ref = -0.5 * jnp.sum(1.0 + clv - cm ** 2 - jnp.exp(clv), axis=1) * variational_weight

    # --- training forward (Pallas kernel hot path), single-block grid ---
    out = variational_code_dict_forward(
        mean_table, logvar_table, key_indices,
        variational_weight=variational_weight, training=True, rng_key=k_eps1)
    code, kld = out["code"], out["kld"]
    jax.block_until_ready(code)
    jax.block_until_ready(kld)
    assert code.shape == (B, num_dims) and kld.shape == (B,)
    assert jnp.allclose(kld, kld_ref, atol=1e-5, rtol=1e-5), "kld mismatch"

    # exact code check: reproduce the wrapper's eps layout with the same rng key
    P, nb, TB, Bp = _block_plan(B, num_dims)
    eps_full = jax.random.normal(k_eps1, (Bp // P, P * num_dims), dtype=jnp.float32
                                 ).reshape(Bp, num_dims)[:B]
    code_exact = eps_full * jnp.exp(0.5 * clv) + cm
    assert jnp.allclose(code, code_exact, atol=1e-5, rtol=1e-5), "code mismatch"

    # same rng key -> identical samples
    out_again = variational_code_dict_forward(
        mean_table, logvar_table, key_indices,
        variational_weight=variational_weight, training=True, rng_key=k_eps1)
    assert jnp.array_equal(out_again["code"], code)

    # --- near-zero variance: code must equal the gathered means (validates the gather) ---
    logvar_tiny = -20.0 * jnp.ones((K, num_dims), jnp.float32)
    out_det = variational_code_dict_forward(
        mean_table, logvar_tiny, key_indices,
        variational_weight=variational_weight, training=True, rng_key=k_eps2)
    jax.block_until_ready(out_det["code"])
    assert jnp.allclose(out_det["code"], cm, atol=1e-3), "fused gather mismatch"
    clv_t = jnp.take(logvar_tiny, key_indices, axis=0)
    kld_t_ref = -0.5 * jnp.sum(1.0 + clv_t - cm ** 2 - jnp.exp(clv_t),
                               axis=1) * variational_weight
    assert jnp.allclose(out_det["kld"], kld_t_ref, atol=1e-5, rtol=1e-5)

    # --- multi-block path (nb >= 2: exercises padding + 'parallel' grid sharding) ---
    B2 = 2050
    key_indices2 = jax.random.randint(k_idx2, (B2,), 0, K, dtype=jnp.int32)
    out2 = variational_code_dict_forward(
        mean_table, logvar_table, key_indices2,
        variational_weight=variational_weight, training=True, rng_key=k_eps2)
    jax.block_until_ready(out2["code"])
    assert out2["code"].shape == (B2, num_dims) and out2["kld"].shape == (B2,)
    cm2 = jnp.take(mean_table, key_indices2, axis=0)
    clv2 = jnp.take(logvar_table, key_indices2, axis=0)
    kld2_ref = -0.5 * jnp.sum(1.0 + clv2 - cm2 ** 2 - jnp.exp(clv2),
                              axis=1) * variational_weight
    P2, nb2, TB2, Bp2 = _block_plan(B2, num_dims)
    eps2 = jax.random.normal(k_eps2, (Bp2 // P2, P2 * num_dims), dtype=jnp.float32
                             ).reshape(Bp2, num_dims)[:B2]
    assert jnp.allclose(out2["code"], eps2 * jnp.exp(0.5 * clv2) + cm2,
                        atol=1e-5, rtol=1e-5), "multi-block code mismatch"
    assert jnp.allclose(out2["kld"], kld2_ref, atol=1e-5, rtol=1e-5)

    # --- eval forward (code = mean, kld = zeros); pure gather, no kernel required ---
    out_eval = variational_code_dict_forward(
        mean_table, logvar_table, key_indices,
        variational_weight=variational_weight, training=False)
    jax.block_until_ready(out_eval["code"])
    assert jnp.allclose(out_eval["code"], cm)
    assert jnp.allclose(out_eval["kld"], jnp.zeros((B,)))

    print("KERNEL_OK")
</pallas_src>

<mosaic_0001>
module attributes {stable_mosaic.version = 11 : i64} {
  func.func @_vcd_train_kernel(%arg0: i32, %arg1: memref<1xf32, #tpu.memory_space<smem>>, %arg2: memref<32x4xi32, #tpu.memory_space<vmem>>, %arg3: memref<1x128xi32, #tpu.memory_space<vmem>>, %arg4: memref<4x32xf32, #tpu.memory_space<vmem>>, %arg5: memref<4x32xf32, #tpu.memory_space<vmem>>, %arg6: memref<32x128xf32, #tpu.memory_space<vmem>>, %arg7: memref<32x128xf32, #tpu.memory_space<vmem>>, %arg8: memref<1x128xf32, #tpu.memory_space<vmem>>) attributes {dimension_semantics = [#tpu.dimension_semantics<parallel>], iteration_bounds = array<i64: 1>, scalar_prefetch = 0 : i64, scratch_operands = 0 : i64, tpu.core_type = #tpu.core_type<tc>, window_params = [{transform_indices = @transform_0, window_bounds = array<i64: 1>}, {transform_indices = @transform_1, window_bounds = array<i64: 32, 4>}, {transform_indices = @transform_2, window_bounds = array<i64: 1, 128>}, {pipeline_mode = #tpu.pipeline_mode<synchronous>, transform_indices = @transform_3, window_bounds = array<i64: 4, 32>}, {pipeline_mode = #tpu.pipeline_mode<synchronous>, transform_indices = @transform_4, window_bounds = array<i64: 4, 32>}, {transform_indices = @transform_5, window_bounds = array<i64: 32, 128>}, {transform_indices = @transform_6, window_bounds = array<i64: 32, 128>}, {transform_indices = @transform_7, window_bounds = array<i64: 1, 128>}]} {
    %c0 = arith.constant 0 : index
    %c0_0 = arith.constant 0 : index
    %0 = vector.load %arg4[%c0, %c0_0] : memref<4x32xf32, #tpu.memory_space<vmem>>, vector<4x32xf32>
    %c0_1 = arith.constant 0 : index
    %c0_2 = arith.constant 0 : index
    %1 = vector.load %arg5[%c0_1, %c0_2] : memref<4x32xf32, #tpu.memory_space<vmem>>, vector<4x32xf32>
    %cst = arith.constant 5.000000e-01 : f32
    %2 = vector.broadcast %cst : f32 to vector<4x32xf32>
    %3 = arith.mulf %2, %1 : vector<4x32xf32>
    %4 = math.exp %3 : vector<4x32xf32>
    %c0_3 = arith.constant 0 : index
    %5 = memref.load %arg1[%c0_3] : memref<1xf32, #tpu.memory_space<smem>>
    %cst_4 = arith.constant -5.000000e-01 : f32
    %6 = arith.mulf %cst_4, %5 : f32
    %cst_5 = arith.constant 1.000000e+00 : f32
    %7 = vector.broadcast %cst_5 : f32 to vector<4x32xf32>
    %8 = arith.addf %7, %1 : vector<4x32xf32>
    %9 = arith.mulf %0, %0 : vector<4x32xf32>
    %10 = arith.subf %8, %9 : vector<4x32xf32>
    %11 = arith.mulf %4, %4 : vector<4x32xf32>
    %12 = arith.subf %10, %11 : vector<4x32xf32>
    %cst_6 = arith.constant dense<0.000000e+00> : vector<4xf32>
    %13 = vector.multi_reduction <add>, %12, %cst_6 [1] : vector<4x32xf32> to vector<4xf32>
    %14 = vector.shape_cast %13 : vector<4xf32> to vector<4x1xf32>
    %15 = vector.broadcast %6 : f32 to vector<4x1xf32>
    %16 = arith.mulf %15, %14 : vector<4x1xf32>
    %cst_7 = arith.constant 0.000000e+00 : f32
    %17 = vector.broadcast %cst_7 : f32 to vector<4x32xf32>
    %18 = tpu.concatenate %0, %17, %17, %17 in 1 : vector<4x32xf32>, vector<4x32xf32>, vector<4x32xf32>, vector<4x32xf32> -> vector<4x128xf32>
    %19 = tpu.concatenate %17, %0, %17, %17 in 1 : vector<4x32xf32>, vector<4x32xf32>, vector<4x32xf32>, vector<4x32xf32> -> vector<4x128xf32>
    %20 = tpu.concatenate %17, %17, %0, %17 in 1 : vector<4x32xf32>, vector<4x32xf32>, vector<4x32xf32>, vector<4x32xf32> -> vector<4x128xf32>
    %21 = tpu.concatenate %17, %17, %17, %0 in 1 : vector<4x32xf32>, vector<4x32xf32>, vector<4x32xf32>, vector<4x32xf32> -> vector<4x128xf32>
    %22 = tpu.concatenate %18, %19, %20, %21 in 0 : vector<4x128xf32>, vector<4x128xf32>, vector<4x128xf32>, vector<4x128xf32> -> vector<16x128xf32>
    %cst_8 = arith.constant 0.000000e+00 : f32
    %23 = vector.broadcast %cst_8 : f32 to vector<4x32xf32>
    %24 = tpu.concatenate %4, %23, %23, %23 in 1 : vector<4x32xf32>, vector<4x32xf32>, vector<4x32xf32>, vector<4x32xf32> -> vector<4x128xf32>
    %25 = tpu.concatenate %23, %4, %23, %23 in 1 : vector<4x32xf32>, vector<4x32xf32>, vector<4x32xf32>, vector<4x32xf32> -> vector<4x128xf32>
    %26 = tpu.concatenate %23, %23, %4, %23 in 1 : vector<4x32xf32>, vector<4x32xf32>, vector<4x32xf32>, vector<4x32xf32> -> vector<4x128xf32>
    %27 = tpu.concatenate %23, %23, %23, %4 in 1 : vector<4x32xf32>, vector<4x32xf32>, vector<4x32xf32>, vector<4x32xf32> -> vector<4x128xf32>
    %28 = tpu.concatenate %24, %25, %26, %27 in 0 : vector<4x128xf32>, vector<4x128xf32>, vector<4x128xf32>, vector<4x128xf32> -> vector<16x128xf32>
    %c0_9 = arith.constant 0 : index
    %c0_10 = arith.constant 0 : index
    %29 = vector.load %arg2[%c0_9, %c0_10] : memref<32x4xi32, #tpu.memory_space<vmem>>, vector<32x4xi32>
    %30 = tpu.iota {dimensions = array<i32: 1>} : vector<32x16xi32>
    %cst_11 = arith.constant 0.000000e+00 : f32
    %31 = vector.broadcast %cst_11 : f32 to vector<32x16xf32>
    %32 = vector.extract_strided_slice %29 {offsets = [0, 0], sizes = [32, 1], strides = [1, 1]} : vector<32x4xi32> to vector<32x1xi32>
    %c0_i32 = arith.constant 0 : i32
    %33 = vector.broadcast %c0_i32 : i32 to vector<32x1xi32>
    %34 = arith.addi %32, %33 : vector<32x1xi32>
    %35 = vector.broadcast %34 : vector<32x1xi32> to vector<32x16xi32>
    %36 = arith.cmpi eq, %35, %30 : vector<32x16xi32>
    %37 = arith.extui %36 : vector<32x16xi1> to vector<32x16xi32>
    %38 = arith.sitofp %37 : vector<32x16xi32> to vector<32x16xf32>
    %39 = arith.addf %31, %38 : vector<32x16xf32>
    %40 = vector.extract_strided_slice %29 {offsets = [0, 1], sizes = [32, 1], strides = [1, 1]} : vector<32x4xi32> to vector<32x1xi32>
    %c4_i32 = arith.constant 4 : i32
    %41 = vector.broadcast %c4_i32 : i32 to vector<32x1xi32>
    %42 = arith.addi %40, %41 : vector<32x1xi32>
    %43 = vector.broadcast %42 : vector<32x1xi32> to vector<32x16xi32>
    %44 = arith.cmpi eq, %43, %30 : vector<32x16xi32>
    %45 = arith.extui %44 : vector<32x16xi1> to vector<32x16xi32>
    %46 = arith.sitofp %45 : vector<32x16xi32> to vector<32x16xf32>
    %47 = arith.addf %39, %46 : vector<32x16xf32>
    %48 = vector.extract_strided_slice %29 {offsets = [0, 2], sizes = [32, 1], strides = [1, 1]} : vector<32x4xi32> to vector<32x1xi32>
    %c8_i32 = arith.constant 8 : i32
    %49 = vector.broadcast %c8_i32 : i32 to vector<32x1xi32>
    %50 = arith.addi %48, %49 : vector<32x1xi32>
    %51 = vector.broadcast %50 : vector<32x1xi32> to vector<32x16xi32>
    %52 = arith.cmpi eq, %51, %30 : vector<32x16xi32>
    %53 = arith.extui %52 : vector<32x16xi1> to vector<32x16xi32>
    %54 = arith.sitofp %53 : vector<32x16xi32> to vector<32x16xf32>
    %55 = arith.addf %47, %54 : vector<32x16xf32>
    %56 = vector.extract_strided_slice %29 {offsets = [0, 3], sizes = [32, 1], strides = [1, 1]} : vector<32x4xi32> to vector<32x1xi32>
    %c12_i32 = arith.constant 12 : i32
    %57 = vector.broadcast %c12_i32 : i32 to vector<32x1xi32>
    %58 = arith.addi %56, %57 : vector<32x1xi32>
    %59 = vector.broadcast %58 : vector<32x1xi32> to vector<32x16xi32>
    %60 = arith.cmpi eq, %59, %30 : vector<32x16xi32>
    %61 = arith.extui %60 : vector<32x16xi1> to vector<32x16xi32>
    %62 = arith.sitofp %61 : vector<32x16xi32> to vector<32x16xf32>
    %63 = arith.addf %55, %62 : vector<32x16xf32>
    %cst_12 = arith.constant dense<0.000000e+00> : vector<32x128xf32>
    %64 = tpu.matmul %63, %22, %cst_12 {dimension_numbers = #tpu.dot_dimension_numbers<[1], [0], [0], [1], [0, 0, 1, 1], [], []>} : vector<32x16xf32>, vector<16x128xf32>, vector<32x128xf32> -> vector<32x128xf32>
    %cst_13 = arith.constant dense<0.000000e+00> : vector<32x128xf32>
    %65 = tpu.matmul %63, %28, %cst_13 {dimension_numbers = #tpu.dot_dimension_numbers<[1], [0], [0], [1], [0, 0, 1, 1], [], []>} : vector<32x16xf32>, vector<16x128xf32>, vector<32x128xf32> -> vector<32x128xf32>
    %c0_14 = arith.constant 0 : index
    %c0_15 = arith.constant 0 : index
    %66 = vector.load %arg6[%c0_14, %c0_15] : memref<32x128xf32, #tpu.memory_space<vmem>>, vector<32x128xf32>
    %67 = arith.mulf %66, %65 : vector<32x128xf32>
    %68 = arith.addf %67, %64 : vector<32x128xf32>
    %c0_16 = arith.constant 0 : index
    %c0_17 = arith.constant 0 : index
    %69 = vector.load %arg7[%c0_16, %c0_17] : memref<32x128xf32, #tpu.memory_space<vmem>>, vector<32x128xf32>
    tpu.vector_store %arg7[%c0_16, %c0_17], %68 {strides = array<i32>} : memref<32x128xf32, #tpu.memory_space<vmem>>, vector<32x128xf32>,
    %c0_18 = arith.constant 0 : index
    %c0_19 = arith.constant 0 : index
    %70 = vector.load %arg3[%c0_18, %c0_19] : memref<1x128xi32, #tpu.memory_space<vmem>>, vector<1x128xi32>
    %71 = tpu.iota {dimensions = array<i32: 0>} : vector<4x128xi32>
    %72 = vector.broadcast %70 : vector<1x128xi32> to vector<4x128xi32>
    %73 = arith.cmpi eq, %72, %71 : vector<4x128xi32>
    %74 = arith.extui %73 : vector<4x128xi1> to vector<4x128xi32>
    %75 = arith.sitofp %74 : vector<4x128xi32> to vector<4x128xf32>
    %76 = vector.broadcast %16 : vector<4x1xf32> to vector<4x128xf32>
    %77 = arith.mulf %75, %76 : vector<4x128xf32>
    %cst_20 = arith.constant dense<0.000000e+00> : vector<128xf32>
    %78 = vector.multi_reduction <add>, %77, %cst_20 [0] : vector<4x128xf32> to vector<128xf32>
    %79 = vector.shape_cast %78 : vector<128xf32> to vector<1x128xf32>
    %c0_21 = arith.constant 0 : index
    %c0_22 = arith.constant 0 : index
    %80 = vector.load %arg8[%c0_21, %c0_22] : memref<1x128xf32, #tpu.memory_space<vmem>>, vector<1x128xf32>
    tpu.vector_store %arg8[%c0_21, %c0_22], %79 {strides = array<i32>} : memref<1x128xf32, #tpu.memory_space<vmem>>, vector<1x128xf32>,
    return
  }
  func.func @transform_0(%arg0: i32) -> i32 {
    %c0_i32 = arith.constant 0 : i32
    %c0_i32_0 = arith.constant 0 : i32
    return %c0_i32 : i32
  }
  func.func @transform_1(%arg0: i32) -> (i32, i32) {
    %c0_i32 = arith.constant 0 : i32
    %c0_i32_0 = arith.constant 0 : i32
    return %arg0, %c0_i32 : i32, i32
  }
  func.func @transform_2(%arg0: i32) -> (i32, i32) {
    %c0_i32 = arith.constant 0 : i32
    %c0_i32_0 = arith.constant 0 : i32
    return %c0_i32, %arg0 : i32, i32
  }
  func.func @transform_3(%arg0: i32) -> (i32, i32) {
    %c0_i32 = arith.constant 0 : i32
    %c0_i32_0 = arith.constant 0 : i32
    %c0_i32_1 = arith.constant 0 : i32
    return %c0_i32, %c0_i32_0 : i32, i32
  }
  func.func @transform_4(%arg0: i32) -> (i32, i32) {
    %c0_i32 = arith.constant 0 : i32
    %c0_i32_0 = arith.constant 0 : i32
    %c0_i32_1 = arith.constant 0 : i32
    return %c0_i32, %c0_i32_0 : i32, i32
  }
  func.func @transform_5(%arg0: i32) -> (i32, i32) {
    %c0_i32 = arith.constant 0 : i32
    %c0_i32_0 = arith.constant 0 : i32
    return %arg0, %c0_i32 : i32, i32
  }
  func.func @transform_6(%arg0: i32) -> (i32, i32) {
    %c0_i32 = arith.constant 0 : i32
    %c0_i32_0 = arith.constant 0 : i32
    return %arg0, %c0_i32 : i32, i32
  }
  func.func @transform_7(%arg0: i32) -> (i32, i32) {
    %c0_i32 = arith.constant 0 : i32
    %c0_i32_0 = arith.constant 0 : i32
    return %c0_i32, %arg0 : i32, i32
  }
}

</mosaic_0001>

<llo_original>
// kernel: tpu_custom_call.1
$region0: #{tpu_custom_call.1}
  #allocation0 [shape = 'u32[]', space=smem, size = 0x4, offset = 0x4, fixed_abs, tag = 'smem constant byte address 0x4 - core index']
  #allocation1 [shape = 'u32[72,128]{1,0:T(1,128)}', space=vmem, size = 0x9000, scoped, tag = 'internal scratch']
  #allocation2 [shape = 'f32[1]{0:T(128)S(6)}', space=smem, size = 0x200, scoped, tag = 'scoped memory for tpu_custom_call.1']
  %s0 = inlined_call_operand.<no memory space> [shape: f32[1], index: 0, kind: input, shape index: {}]
  %s1 = inlined_call_operand.vmem [shape: s32[32,4], index: 1, kind: input, shape index: {}]
  %s2 = inlined_call_operand.vmem [shape: s32[1,128], index: 2, kind: input, shape index: {}]
  %s3 = inlined_call_operand.vmem [shape: f32[4,32], index: 3, kind: input, shape index: {}]
  %s4 = inlined_call_operand.vmem [shape: f32[4,32], index: 4, kind: input, shape index: {}]
  %s5 = inlined_call_operand.vmem [shape: f32[32,128], index: 5, kind: input, shape index: {}]
  %s6 = inlined_call_operand.hbm [shape: f32[32,128], index: 6, kind: output, shape index: {0}]
  %s7 = inlined_call_operand.hbm [shape: f32[1,128], index: 7, kind: output, shape index: {1}]
  %8 = xla_tuple %s6, %s7
  %s9 = sld [smem:[#allocation0]]
  $region42: #{tpu_custom_call.1} parent=0
    _
  %s11 = ssub.s32 1, %s9
  %s12 = scalar_select 0, %s11, %s9
  %13 = sst [smem:[#allocation2]] %s0
  $region1: #{tpu_custom_call.1} parent=0
    #allocation3 [shape = 'u8[16384]{0}', space=vmem, size = 0x4000, scoped, tag = 'output window, operand 0, single buffered']
    #allocation4 [shape = 's32[1]{0}', space=sflag, size = 0x4, scoped, tag = 'scoped memory for tpu_custom_call.1']
    #allocation5 [shape = 'u8[512]{0}', space=vmem, size = 0x400, scoped, tag = 'output window, operand 1, single buffered']
    #allocation6 [shape = 's32[1]{0}', space=sflag, size = 0x4, scoped, tag = 'scoped memory for tpu_custom_call.1']
    %14 = vsyncpa [#allocation4], 0
    %15 = vsyncpa [#allocation6], 0
    // Predicated region
    $region2: #{tpu_custom_call.1} parent=1 // pred_check
      _
    $region3: #{tpu_custom_call.1} parent=1 // pred_check_branch
      %17 = sbr.rel (0) target = $region5
    $region4: #{tpu_custom_call.1} parent=1 // pred_region
      _
    $region5: #{tpu_custom_call.1} parent=1 // pred_fallthru
      _
    // Predicated region
    $region6: #{tpu_custom_call.1} parent=1 // pred_check
      _
    $region7: #{tpu_custom_call.1} parent=1 // pred_check_branch
      %19 = sbr.rel (0) target = $region9
    $region8: #{tpu_custom_call.1} parent=1 // pred_region
      _
    $region9: #{tpu_custom_call.1} parent=1 // pred_fallthru
      _
    // Predicated region
    $region10: #{tpu_custom_call.1} parent=1 // pred_check
      _
    $region11: #{tpu_custom_call.1} parent=1 // pred_check_branch
      %21 = sbr.rel (0) target = $region13
    $region12: #{tpu_custom_call.1} parent=1 // pred_region
      _
    $region13: #{tpu_custom_call.1} parent=1 // pred_fallthru
      _
    // Predicated region
    $region14: #{tpu_custom_call.1} parent=1 // pred_check
      _
    $region15: #{tpu_custom_call.1} parent=1 // pred_check_branch
      %23 = sbr.rel (0) target = $region17
    $region16: #{tpu_custom_call.1} parent=1 // pred_region
      _
    $region17: #{tpu_custom_call.1} parent=1 // pred_fallthru
      _
    // Predicated region
    $region18: #{tpu_custom_call.1} parent=1 // pred_check
      _
    $region19: #{tpu_custom_call.1} parent=1 // pred_check_branch
      %25 = sbr.rel (0) target = $region21
    $region20: #{tpu_custom_call.1} parent=1 // pred_region
      _
    $region21: #{tpu_custom_call.1} parent=1 // pred_fallthru
      _
    // Predicated region
    $region22: #{tpu_custom_call.1} parent=1 // pred_check
      _
    $region23: #{tpu_custom_call.1} parent=1 // pred_check_branch
      %27 = sbr.rel (0) target = $region25
    $region24: #{tpu_custom_call.1} parent=1 // pred_region
      _
    $region25: #{tpu_custom_call.1} parent=1 // pred_fallthru
      _
    %v28 = vld [vmem:[%s3] sm:$0xf]
    %v29 = vld [vmem:[%s4] sm:$0xf]
    %v30 = vmul.f32 %v29, 0.5
    %v31 = vmul.f32 %v30, 1.442695
    %v32 = vpow.pop %v31
    %s33 = sld [smem:[#allocation2]]
    %s34 = smul.f32 %s33, -0.5
    %v35 = vadd.f32 %v29, 1.0
    %v36 = vmul.f32 %v28, %v28
    %v37 = vsub.f32 %v35, %v36
    %v38 = vmul.f32 %v32, %v32
    %v39 = vsub.f32 %v37, %v38
    %vm40 = vcmask 257024
    %v41 = vsel %vm40, %v39, 0.0
    %42 = vadd.xlane.f32.xlu0 %v41
    %v43 = vpop.xlane.xlu0 %42
    %v44 = vstv %s34
    %v45 = vmul.f32 %v44, %v43
    %vm46 = vcmask 261120
    %v47 = vsel %vm46, %v28, 0.0
    %vm48 = vcmask 523264
    %v49 = vsel %vm48, %v47, 0.0
    %vm50 = vcmask 785408
    %v51 = vsel %vm50, %v49, 0.0
    %53 = vrot.lane.b32.xlu0 %v28, 32
    %v54 = vpop.permute.xlu0 %53
    %v56 = vsel %vm46, 0.0, %v54
    %v57 = vsel %vm48, %v56, 0.0
    %v58 = vsel %vm50, %v57, 0.0
    %59 = vrot.lane.b32.xlu0 %v28, 64
    %v60 = vpop.permute.xlu0 %59
    %v62 = vsel %vm48, 0.0, %v60
    %v63 = vsel %vm50, %v62, 0.0
    %64 = vrot.lane.b32.xlu0 %v28, 96
    %v65 = vpop.permute.xlu0 %64
    %v67 = vsel %vm50, 0.0, %v65
    %v69 = vrot.slane %v58, 4
    %v72 = vrot.slane %v67, 4
    %vm74 = vcmask 1043456
    %v75 = vsel %vm74, %v51, %v69
    %v76 = vsel %vm74, %v63, %v72
    %v77 = vsel %vm46, %v32, 0.0
    %v78 = vsel %vm48, %v77, 0.0
    %v79 = vsel %vm50, %v78, 0.0
    %81 = vrot.lane.b32.xlu0 %v32, 32
    %v82 = vpop.permute.xlu0 %81
    %v84 = vsel %vm46, 0.0, %v82
    %v85 = vsel %vm48, %v84, 0.0
    %v86 = vsel %vm50, %v85, 0.0
    %87 = vrot.lane.b32.xlu0 %v32, 64
    %v88 = vpop.permute.xlu0 %87
    %v90 = vsel %vm48, 0.0, %v88
    %v91 = vsel %vm50, %v90, 0.0
    %92 = vrot.lane.b32.xlu0 %v32, 96
    %v93 = vpop.permute.xlu0 %92
    %v95 = vsel %vm50, 0.0, %v93
    %v97 = vrot.slane %v86, 4
    %v100 = vrot.slane %v95, 4
    %v102 = vsel %vm74, %v79, %v97
    %v103 = vsel %vm74, %v91, %v100
    %v104 = vld [vmem:[%s1] sm:$0xff]
    %v105 = vld [vmem:[%s1 + $0x8] sm:$0xff]
    %v106 = vld [vmem:[%s1 + $0x10] sm:$0xff]
    %v107 = vld [vmem:[%s1 + $0x18] sm:$0xff]
    %v108 = vlaneseq
    %v109 = vand.u32 %v108, 127
    %110 = vset.pattern.permute.xlu0 0
    %111 = vperm.xlu0 %110, %v104
    %v112 = vpop.permute.xlu0 %111
    %113 = vset.pattern.permute.xlu0 0
    %114 = vperm.xlu0 %113, %v105
    %v115 = vpop.permute.xlu0 %114
    %116 = vset.pattern.permute.xlu0 0
    %117 = vperm.xlu0 %116, %v106
    %v118 = vpop.permute.xlu0 %117
    %119 = vset.pattern.permute.xlu0 0
    %120 = vperm.xlu0 %119, %v107
    %v121 = vpop.permute.xlu0 %120
    %vm122 = vcmp.eq.s32.totalorder %v112, %v109
    %vm123 = vcmp.eq.s32.totalorder %v115, %v109
    %vm124 = vcmp.eq.s32.totalorder %v118, %v109
    %vm125 = vcmp.eq.s32.totalorder %v121, %v109
    %v126 = vsel %vm122, 1, 0
    %v127 = vsel %vm123, 1, 0
    %v128 = vsel %vm124, 1, 0
    %v129 = vsel %vm125, 1, 0
    %v130 = vcvt.s32.f32 %v126
    %v131 = vcvt.s32.f32 %v127
    %v132 = vcvt.s32.f32 %v128
    %v133 = vcvt.s32.f32 %v129
    %v134 = vadd.f32 %v130, 0.0
    %v135 = vadd.f32 %v131, 0.0
    %v136 = vadd.f32 %v132, 0.0
    %v137 = vadd.f32 %v133, 0.0
    %v138 = vadd.s32 %v104, 4
    %v139 = vadd.s32 %v105, 4
    %v140 = vadd.s32 %v106, 4
    %v141 = vadd.s32 %v107, 4
    %142 = vset.pattern.permute.xlu0 1
    %143 = vperm.xlu0 %142, %v138
    %v144 = vpop.permute.xlu0 %143
    %145 = vset.pattern.permute.xlu0 1
    %146 = vperm.xlu0 %145, %v139
    %v147 = vpop.permute.xlu0 %146
    %148 = vset.pattern.permute.xlu0 1
    %149 = vperm.xlu0 %148, %v140
    %v150 = vpop.permute.xlu0 %149
    %151 = vset.pattern.permute.xlu0 1
    %152 = vperm.xlu0 %151, %v141
    %v153 = vpop.permute.xlu0 %152
    %vm154 = vcmp.eq.s32.totalorder %v144, %v109
    %vm155 = vcmp.eq.s32.totalorder %v147, %v109
    %vm156 = vcmp.eq.s32.totalorder %v150, %v109
    %vm157 = vcmp.eq.s32.totalorder %v153, %v109
    %v158 = vsel %vm154, 1, 0
    %v159 = vsel %vm155, 1, 0
    %v160 = vsel %vm156, 1, 0
    %v161 = vsel %vm157, 1, 0
    %v162 = vcvt.s32.f32 %v158
    %v163 = vcvt.s32.f32 %v159
    %v164 = vcvt.s32.f32 %v160
    %v165 = vcvt.s32.f32 %v161
    %v166 = vadd.f32 %v134, %v162
    %v167 = vadd.f32 %v135, %v163
    %v168 = vadd.f32 %v136, %v164
    %v169 = vadd.f32 %v137, %v165
    %v170 = vadd.s32 %v104, 8
    %v171 = vadd.s32 %v105, 8
    %v172 = vadd.s32 %v106, 8
    %v173 = vadd.s32 %v107, 8
    %174 = vset.pattern.permute.xlu0 2
    %175 = vperm.xlu0 %174, %v170
    %v176 = vpop.permute.xlu0 %175
    %177 = vset.pattern.permute.xlu0 2
    %178 = vperm.xlu0 %177, %v171
    %v179 = vpop.permute.xlu0 %178
    %180 = vset.pattern.permute.xlu0 2
    %181 = vperm.xlu0 %180, %v172
    %v182 = vpop.permute.xlu0 %181
    %183 = vset.pattern.permute.xlu0 2
    %184 = vperm.xlu0 %183, %v173
    %v185 = vpop.permute.xlu0 %184
    %vm186 = vcmp.eq.s32.totalorder %v176, %v109
    %vm187 = vcmp.eq.s32.totalorder %v179, %v109
    %vm188 = vcmp.eq.s32.totalorder %v182, %v109
    %vm189 = vcmp.eq.s32.totalorder %v185, %v109
    %v190 = vsel %vm186, 1, 0
    %v191 = vsel %vm187, 1, 0
    %v192 = vsel %vm188, 1, 0
    %v193 = vsel %vm189, 1, 0
    %v194 = vcvt.s32.f32 %v190
    %v195 = vcvt.s32.f32 %v191
    %v196 = vcvt.s32.f32 %v192
    %v197 = vcvt.s32.f32 %v193
    %v198 = vadd.f32 %v166, %v194
    %v199 = vadd.f32 %v167, %v195
    %v200 = vadd.f32 %v168, %v196
    %v201 = vadd.f32 %v169, %v197
    %v202 = vadd.s32 %v104, 12
    %v203 = vadd.s32 %v105, 12
    %v204 = vadd.s32 %v106, 12
    %v205 = vadd.s32 %v107, 12
    %206 = vset.pattern.permute.xlu0 3
    %207 = vperm.xlu0 %206, %v202
    %v208 = vpop.permute.xlu0 %207
    %209 = vset.pattern.permute.xlu0 3
    %210 = vperm.xlu0 %209, %v203
    %v211 = vpop.permute.xlu0 %210
    %212 = vset.pattern.permute.xlu0 3
    %213 = vperm.xlu0 %212, %v204
    %v214 = vpop.permute.xlu0 %213
    %215 = vset.pattern.permute.xlu0 3
    %216 = vperm.xlu0 %215, %v205
    %v217 = vpop.permute.xlu0 %216
    %vm218 = vcmp.eq.s32.totalorder %v208, %v109
    %vm219 = vcmp.eq.s32.totalorder %v211, %v109
    %vm220 = vcmp.eq.s32.totalorder %v214, %v109
    %vm221 = vcmp.eq.s32.totalorder %v217, %v109
    %v222 = vsel %vm218, 1, 0
    %v223 = vsel %vm219, 1, 0
    %v224 = vsel %vm220, 1, 0
    %v225 = vsel %vm221, 1, 0
    %v226 = vcvt.s32.f32 %v222
    %v227 = vcvt.s32.f32 %v223
    %v228 = vcvt.s32.f32 %v224
    %v229 = vcvt.s32.f32 %v225
    %v230 = vadd.f32 %v198, %v226
    %v231 = vadd.f32 %v199, %v227
    %v232 = vadd.f32 %v200, %v228
    %v233 = vadd.f32 %v201, %v229
    %vm234 = vcmask 130048
    %v236 = vsel %vm234, %v230, 0
    %v239 = vsel %vm234, %v231, 0
    %v242 = vsel %vm234, %v232, 0
    %v245 = vsel %vm234, %v233, 0
    %247 = vmatpush.msra.mxu0 0.0
    %248 = vmatpush.msra.mxu0 0.0
    %249 = vmatpush.msra.mxu0 0.0
    %250 = vmatpush.msra.mxu0 0.0
    %251 = vmatpush.msra.mxu0 0.0
    %252 = vmatpush.msra.mxu0 0.0
    %253 = vmatpush.msra.mxu0 0.0
    %254 = vmatpush.msra.mxu0 0.0
    %255 = vmatpush.msra.mxu0 0.0
    %256 = vmatpush.msra.mxu0 0.0
    %257 = vmatpush.msra.mxu0 0.0
    %258 = vmatpush.msra.mxu0 0.0
    %259 = vmatpush.msra.mxu0 0.0
    %260 = vmatpush.msra.mxu0 0.0
    %261 = vmatpush.msra.mxu0 %v76
    %262 = vmatpush.msra.mxu0 %v75
    %263 = vmatmul.f32.gmra.mxu0 %v236
    %v264 = vpop.f32.mrf.mxu0
    %v265 = vadd.f32 0.0, %v264
    %266 = vmatmul.f32.gmra.mxu0 %v239
    %v267 = vpop.f32.mrf.mxu0
    %v268 = vadd.f32 0.0, %v267
    %269 = vmatmul.f32.gmra.mxu0 %v242
    %v270 = vpop.f32.mrf.mxu0
    %v271 = vadd.f32 0.0, %v270
    %272 = vmatmul.f32.gmra.mxu0 %v245
    %v273 = vpop.f32.mrf.mxu0
    %v274 = vadd.f32 0.0, %v273
    %275 = vdwg.mxu0
    %276 = vmatpush.msra.mxu0 0.0
    %277 = vmatpush.msra.mxu0 0.0
    %278 = vmatpush.msra.mxu0 0.0
    %279 = vmatpush.msra.mxu0 0.0
    %280 = vmatpush.msra.mxu0 0.0
    %281 = vmatpush.msra.mxu0 0.0
    %282 = vmatpush.msra.mxu0 0.0
    %283 = vmatpush.msra.mxu0 0.0
    %284 = vmatpush.msra.mxu0 0.0
    %285 = vmatpush.msra.mxu0 0.0
    %286 = vmatpush.msra.mxu0 0.0
    %287 = vmatpush.msra.mxu0 0.0
    %288 = vmatpush.msra.mxu0 0.0
    %289 = vmatpush.msra.mxu0 0.0
    %290 = vmatpush.msra.mxu0 %v103
    %291 = vmatpush.msra.mxu0 %v102
    %292 = vmatmul.f32.gmra.mxu0 %v236
    %v293 = vpop.f32.mrf.mxu0
    %v294 = vadd.f32 0.0, %v293
    %295 = vmatmul.f32.gmra.mxu0 %v239
    %v296 = vpop.f32.mrf.mxu0
    %v297 = vadd.f32 0.0, %v296
    %298 = vmatmul.f32.gmra.mxu0 %v242
    %v299 = vpop.f32.mrf.mxu0
    %v300 = vadd.f32 0.0, %v299
    %301 = vmatmul.f32.gmra.mxu0 %v245
    %v302 = vpop.f32.mrf.mxu0
    %v303 = vadd.f32 0.0, %v302
    %304 = vdwg.mxu0
    %v305 = vld [vmem:[%s5] sm:$0xff]
    %v306 = vld [vmem:[%s5 + $0x8] sm:$0xff]
    %v307 = vld [vmem:[%s5 + $0x10] sm:$0xff]
    %v308 = vld [vmem:[%s5 + $0x18] sm:$0xff]
    %v309 = vmul.f32 %v305, %v294
    %v310 = vmul.f32 %v306, %v297
    %v311 = vmul.f32 %v307, %v300
    %v312 = vmul.f32 %v308, %v303
    %v313 = vadd.f32 %v309, %v265
    %v314 = vadd.f32 %v310, %v268
    %v315 = vadd.f32 %v311, %v271
    %v316 = vadd.f32 %v312, %v274
    %317 = vst [vmem:[#allocation3] sm:$0xff] %v313
    %318 = vst [vmem:[#allocation3 + $0x8] sm:$0xff] %v314
    %319 = vst [vmem:[#allocation3 + $0x10] sm:$0xff] %v315
    %320 = vst [vmem:[#allocation3 + $0x18] sm:$0xff] %v316
    %v321 = vld [vmem:[%s2] sm:$0x1]
    %v322 = vlaneseq
    %v323 = vshrl.u32 %v322, 7
    %v324 = vperm.slane %v321, 0
    %vm325 = vcmp.eq.s32.totalorder %v324, %v323
    %v326 = vsel %vm325, 1, 0
    %v327 = vcvt.s32.f32 %v326
    %v328 = vmul.f32 %v327, %v45
    %v329 = vsel %vm74, %v328, 0.0
    %v330 = vrot.slane %v329, 4
    %v331 = vadd.f32 %v329, %v330
    %v332 = vrot.slane %v331, 2
    %v333 = vadd.f32 %v331, %v332
    %v334 = vrot.slane %v333, 1
    %v335 = vadd.f32 %v333, %v334
    %336 = vst [vmem:[#allocation5] sm:$0x1] %v335
    // Predicated region
    $region26: #{tpu_custom_call.1} parent=1 // pred_check
      _
    $region27: #{tpu_custom_call.1} parent=1 // pred_check_branch
      %338 = sbr.rel (0) target = $region29
    $region28: #{tpu_custom_call.1} parent=1 // pred_region
      %340 = vsyncadd [#allocation4], 0
      %s341 = sshll.u32 [#allocation3], 4
      %s342 = int_to_ptr.vmem [resolvable:$true] %s341
      %s343 = sshll.u32 %s6, 4
      %s344 = int_to_ptr.hbm [resolvable:$true] %s343
      %349 = dma.vmem_to_hbm [thread:$0]  %s342, 512, %s344, [#allocation4], 128, 128, 8
    $region29: #{tpu_custom_call.1} parent=1 // pred_fallthru
      _
    // Predicated region
    $region30: #{tpu_custom_call.1} parent=1 // pred_check
      _
    $region31: #{tpu_custom_call.1} parent=1 // pred_check_branch
      %351 = sbr.rel (0) target = $region33
    $region32: #{tpu_custom_call.1} parent=1 // pred_region
      %353 = vsyncadd [#allocation6], 0
      %s355 = sshll.u32 [#allocation5], 4
      %s356 = int_to_ptr.vmem [resolvable:$true] %s355
      %s357 = sshll.u32 %s7, 4
      %s358 = int_to_ptr.hbm [resolvable:$true] %s357
      %360 = dma.vmem_to_hbm [thread:$0]  %s356, 16, %s358, [#allocation6]
    $region33: #{tpu_custom_call.1} parent=1 // pred_fallthru
      _
    // Predicated region
    $region34: #{tpu_custom_call.1} parent=1 // pred_check
      _
    $region35: #{tpu_custom_call.1} parent=1 // pred_check_branch
      %362 = sbr.rel (0) target = $region37
    $region36: #{tpu_custom_call.1} parent=1 // pred_region
      %364 = dma.done [#allocation4], 512
    $region37: #{tpu_custom_call.1} parent=1 // pred_fallthru
      _
    // Predicated region
    $region38: #{tpu_custom_call.1} parent=1 // pred_check
      _
    $region39: #{tpu_custom_call.1} parent=1 // pred_check_branch
      %366 = sbr.rel (0) target = $region41
    $region40: #{tpu_custom_call.1} parent=1 // pred_region
      %368 = dma.done [#allocation6], 16
    $region41: #{tpu_custom_call.1} parent=1 // pred_fallthru
      _
    %369 = vsyncpa [#allocation4], 1
    %370 = vsyncpa [#allocation6], 1

</llo_original>
